<compile_context>
chip_gen: v5e
topology: v5e:2x2
jax: 0.10.0
libtpu: 0.0.40
codegen_flags: <defaults>
</compile_context>

<pallas_src>
import functools

import jax
import jax.numpy as jnp
import numpy as np
from jax.experimental import pallas as pl
from jax.experimental.pallas import tpu as pltpu


# ---------------------------------------------------------------------------
# Kernel
# ---------------------------------------------------------------------------
def _interp_ps_kernel(x_ref, xtop_ref, xbot_ref, gv_ref, gh_ref, o_ref, tmp_ref):
    # x_ref   : (1, 1, TH, W)     current H-band of the input image
    # xtop_ref: (1, 1, 8,  W)     8-row block whose row 7 is the row just above the band
    # xbot_ref: (1, 1, 8,  W)     8-row block whose row 0 is the row just below the band
    # gv_ref  : (2*TH, TH)        constant vertical interp + row (dy) interleave operator
    # gh_ref  : (TW, 2*TW)        constant banded horizontal interp + column (dx) interleave
    # o_ref   : (1, 1, 2*TH, 2*W) fused conv + pixelshuffle output band
    # tmp_ref : (2*TH, W) f32     vertically-interpolated intermediate (scratch)
    th = x_ref.shape[2]
    w = x_ref.shape[3]
    tw = gh_ref.shape[0]
    nc = w // tw

    i = pl.program_id(1)
    n_h = pl.num_programs(1)

    # ---- vertical interpolation + row interleave: one MXU matmul over the whole band.
    tmp_ref[...] = jnp.dot(gv_ref[...], x_ref[0, 0],
                           preferred_element_type=jnp.float32)            # (2TH, W)

    # ---- row halo: only rows 0 / 2TH-1 of the band see the neighbouring H-band.
    #      Targeted 1-row overwrites with the exact 2-tap value; the halo row is zeroed
    #      at the image top/bottom where the conv's zero padding applies.
    top_scale = jnp.where(i == 0, 0.0, 0.25)
    bot_scale = jnp.where(i == n_h - 1, 0.0, 0.25)
    tmp_ref[0:1, :] = (0.75 * x_ref[0, 0, 0:1, :]
                       + top_scale * xtop_ref[0, 0, 7:8, :])
    tmp_ref[2 * th - 1:2 * th, :] = (0.75 * x_ref[0, 0, th - 1:th, :]
                                     + bot_scale * xbot_ref[0, 0, 0:1, :])

    # ---- horizontal interpolation + column interleave, TW chunk by TW chunk.
    #      Static Python loop: every slice offset is a compile-time constant.
    gh = gh_ref[...]
    for c in range(nc):
        c0 = c * tw
        out_c = jnp.dot(tmp_ref[:, c0:c0 + tw], gh,
                        preferred_element_type=jnp.float32)               # (2TH, 2TW)
        o_ref[0, 0, :, 2 * c0:2 * c0 + 2 * tw] = out_c.astype(o_ref.dtype)
        # Column halos: only the first / last output column of the chunk depends on a
        # column outside the chunk; overwrite those single columns with the exact 2-tap
        # value (targeted (2TH,1) stores, no full-chunk correction pass).  At the image
        # edges (c == 0 / c == nc-1) the matmul value is already correct (zero padding).
        if c > 0:
            left = 0.75 * tmp_ref[:, c0:c0 + 1] + 0.25 * tmp_ref[:, c0 - 1:c0]
            o_ref[0, 0, :, 2 * c0:2 * c0 + 1] = left.astype(o_ref.dtype)
        if c < nc - 1:
            right = (0.75 * tmp_ref[:, c0 + tw - 1:c0 + tw]
                     + 0.25 * tmp_ref[:, c0 + tw:c0 + tw + 1])
            o_ref[0, 0, :, 2 * c0 + 2 * tw - 1:2 * c0 + 2 * tw] = right.astype(o_ref.dtype)


# ---------------------------------------------------------------------------
# Constant operators (module weights are deterministic -> baked here, lru-cached)
# ---------------------------------------------------------------------------
@functools.lru_cache(maxsize=None)
def _upsample_matrix(n: int) -> np.ndarray:
    """(2n, n) banded bilinear 2x-upsample operator.
       row 2i   = 1/4 * e_{i-1} + 3/4 * e_i     (1/4 tap dropped at the leading edge)
       row 2i+1 = 3/4 * e_i     + 1/4 * e_{i+1} (1/4 tap dropped at the trailing edge)"""
    g = np.zeros((2 * n, n), np.float32)
    for i in range(n):
        g[2 * i, i] = 0.75
        if i > 0:
            g[2 * i, i - 1] = 0.25
        g[2 * i + 1, i] = 0.75
        if i + 1 < n:
            g[2 * i + 1, i + 1] = 0.25
    return g


@functools.lru_cache(maxsize=None)
def _gv_const(th: int):
    return jnp.asarray(_upsample_matrix(th))           # (2*th, th)


@functools.lru_cache(maxsize=None)
def _gh_const(tw: int):
    return jnp.asarray(_upsample_matrix(tw).T)          # (tw, 2*tw)


# ---------------------------------------------------------------------------
# Tiling / VMEM heuristics
# ---------------------------------------------------------------------------
def _vmem_limit_bytes() -> int:
    """<= 3/4 of physical VMEM per TensorCore; 48 MiB fallback (safe on v5e/v6e/v7x)."""
    try:
        cap = int(pltpu.get_tpu_info().vmem_capacity_bytes)
    except Exception:
        cap = 64 * 1024 * 1024          # v7x physical per TC (smallest across generations)
    return min((cap * 3) // 4, 96 * 1024 * 1024)


def _vmem_estimate(th: int, w: int, tw: int, itemsize: int) -> int:
    """Per-grid-step working set: double-buffered pipeline buffers + scratch + constants."""
    x_band = 2 * th * w * itemsize                     # input band, 2 pipeline buffers
    out_band = 2 * (2 * th) * (2 * w) * itemsize       # output band, 2 pipeline buffers
    halos = 2 * 2 * 8 * w * itemsize                   # two 8-row halo blocks, 2 buffers each
    tmp = (2 * th) * w * 4                             # f32 scratch
    consts = 2 * (2 * th) * th * itemsize + 2 * tw * (2 * tw) * itemsize
    return x_band + out_band + halos + tmp + consts


def _pick_tile_h(H: int, cap: int) -> int:
    """Largest multiple of 8 that divides H and is <= cap."""
    best = 8
    t = 8
    while t <= min(H, cap):
        if H % t == 0:
            best = t
        t += 8
    return best


# ---------------------------------------------------------------------------
# Wrapper
# ---------------------------------------------------------------------------
def interp2conv_pixelshuffle(x, *, tile_h=None, tile_w=None):
    """x: (N, 1, H, W) -> (N, 1, 2H, 2W). Fused 3x3 bilinear conv + caffe PixelShuffle(2)."""
    N, C, H, W = x.shape
    assert C == 1, "Interp2ConvPixelshuffle only supports input_nc == 1"
    assert H % 8 == 0, "H must be a multiple of 8 (sublane tiling of the halo blocks)"

    vmem_limit = _vmem_limit_bytes()
    itemsize = jnp.dtype(x.dtype).itemsize

    # Horizontal chunk width: small banded operator; TW=128 keeps the MXU K-passes cheap
    # on every generation (perfect fill on v5e's 128-wide MXU, no extra passes elsewhere).
    if tile_w is None:
        tw = 128 if (W % 128 == 0 and W > 128) else W
        # TODO(synk): very wide W that is not a multiple of 128 still falls back to a dense
        # (W, 2W) horizontal operator; pad W or add grid-level W tiling for that case.
    else:
        assert W % tile_w == 0 and (tile_w % 128 == 0 or tile_w == W)
        tw = tile_w

    # H-band height: largest divisor of H (multiple of 8) whose working set fits VMEM.
    if tile_h is None:
        th_cap = 256                    # K = TH fills the MXU; bigger only adds VMEM pressure
        while th_cap > 8 and _vmem_estimate(th_cap, W, tw, itemsize) > vmem_limit:
            th_cap //= 2
        th = _pick_tile_h(H, th_cap)
        # TODO(synk): H whose only small divisor is 8 (e.g. 8*prime) degrades to TH=8;
        # pad H or support a partial last band to keep the contraction dim >= 128.
    else:
        assert H % tile_h == 0 and tile_h % 8 == 0
        th = tile_h

    n_h = H // th
    th8 = th // 8
    nblk8 = H // 8

    gv = _gv_const(th)                  # (2*th, th)   per-band vertical operator
    gh = _gh_const(tw)                  # (tw, 2*tw)   per-chunk banded horizontal operator

    grid_spec = pltpu.PrefetchScalarGridSpec(
        num_scalar_prefetch=0,
        grid=(N, n_h),
        in_specs=[
            # current H-band of the image
            pl.BlockSpec((1, 1, th, W), lambda n, i: (n, 0, i, 0)),
            # 8-row block whose last row is the row just above the band (clamped at the top)
            pl.BlockSpec((1, 1, 8, W),
                         lambda n, i: (n, 0, jnp.maximum(i * th8 - 1, 0), 0)),
            # 8-row block whose first row is the row just below the band (clamped at the bottom)
            pl.BlockSpec((1, 1, 8, W),
                         lambda n, i: (n, 0, jnp.minimum((i + 1) * th8, nblk8 - 1), 0)),
            # constant operators: block index never changes -> stay resident, no re-DMA
            pl.BlockSpec((2 * th, th), lambda n, i: (0, 0)),
            pl.BlockSpec((tw, 2 * tw), lambda n, i: (0, 0)),
        ],
        out_specs=pl.BlockSpec((1, 1, 2 * th, 2 * W), lambda n, i: (n, 0, i, 0)),
        scratch_shapes=[pltpu.VMEM((2 * th, W), jnp.float32)],
    )

    return pl.pallas_call(
        _interp_ps_kernel,
        out_shape=jax.ShapeDtypeStruct((N, 1, 2 * H, 2 * W), x.dtype),
        grid_spec=grid_spec,
        compiler_params=pltpu.CompilerParams(
            dimension_semantics=("parallel", "parallel"),
            vmem_limit_bytes=vmem_limit,
        ),
    )(x, x, x, gv, gh)


# ---------------------------------------------------------------------------
# Reference (matches the PyTorch module) + self-check
# ---------------------------------------------------------------------------
def make_interp_weight(input_nc: int = 1) -> jnp.ndarray:
    """Deterministic buffer from Interp2ConvPixelshuffle.__init__ (caffe mode)."""
    assert input_nc == 1
    kernel = np.array(
        [[[1 / 16.0, 3 / 16.0, 0], [3 / 16.0, 9 / 16.0, 0], [0, 0, 0]],
         [[0.0, 3 / 16.0, 1 / 16.0], [0.0, 9 / 16.0, 3 / 16.0], [0, 0, 0]],
         [[0, 0, 0], [3 / 16.0, 9 / 16.0, 0], [1 / 16.0, 3 / 16.0, 0]],
         [[0, 0, 0], [0, 9 / 16.0, 3 / 16.0], [0, 3 / 16.0, 1 / 16.0]]],
        dtype=np.float32)
    return jnp.asarray(kernel).reshape(4, 1, 3, 3)


def _reference_forward(x, weight):
    conv = jax.lax.conv_general_dilated(
        x, weight, window_strides=(1, 1), padding=((1, 1), (1, 1)),
        dimension_numbers=("NCHW", "OIHW", "NCHW"))
    N, _, H, W = conv.shape
    y = conv.reshape(N, 2, 2, 1, H, W).transpose(0, 3, 4, 1, 5, 2)
    return y.reshape(N, 1, 2 * H, 2 * W)


if __name__ == "__main__":
    key = jax.random.PRNGKey(0)
    k1, k2 = jax.random.split(key)
    weight = make_interp_weight()

    # Primary small-shape check (single band, single chunk).
    x1 = jax.random.normal(k1, (2, 1, 16, 16), dtype=jnp.float32)
    out1 = jax.block_until_ready(interp2conv_pixelshuffle(x1))
    assert out1.shape == (2, 1, 32, 32)
    ref1 = jax.block_until_ready(_reference_forward(x1, weight))
    np.testing.assert_allclose(np.asarray(out1), np.asarray(ref1), atol=2e-3, rtol=2e-3)

    # Forced multi-band / multi-chunk path: exercises row halos, column halos and corners.
    x2 = jax.random.normal(k2, (1, 1, 32, 256), dtype=jnp.float32)
    out2 = jax.block_until_ready(interp2conv_pixelshuffle(x2, tile_h=16, tile_w=128))
    assert out2.shape == (1, 1, 64, 512)
    ref2 = jax.block_until_ready(_reference_forward(x2, weight))
    np.testing.assert_allclose(np.asarray(out2), np.asarray(ref2), atol=2e-3, rtol=2e-3)

    print("KERNEL_OK")
</pallas_src>

<mosaic_0001>
module attributes {stable_mosaic.version = 11 : i64} {
  func.func @_interp_ps_kernel(%arg0: i32, %arg1: i32, %arg2: memref<1x1x16x16xf32, #tpu.memory_space<vmem>>, %arg3: memref<1x1x8x16xf32, #tpu.memory_space<vmem>>, %arg4: memref<1x1x8x16xf32, #tpu.memory_space<vmem>>, %arg5: memref<32x16xf32, #tpu.memory_space<vmem>>, %arg6: memref<16x32xf32, #tpu.memory_space<vmem>>, %arg7: memref<1x1x32x32xf32, #tpu.memory_space<vmem>>, %arg8: memref<32x16xf32, #tpu.memory_space<vmem>>) attributes {dimension_semantics = [#tpu.dimension_semantics<parallel>, #tpu.dimension_semantics<parallel>], iteration_bounds = array<i64: 2, 1>, scalar_prefetch = 0 : i64, scratch_operands = 1 : i64, tpu.core_type = #tpu.core_type<tc>, window_params = [{transform_indices = @transform_0, window_bounds = array<i64: 1, 1, 16, 16>}, {transform_indices = @transform_1, window_bounds = array<i64: 1, 1, 8, 16>}, {transform_indices = @transform_2, window_bounds = array<i64: 1, 1, 8, 16>}, {pipeline_mode = #tpu.pipeline_mode<synchronous>, transform_indices = @transform_3, window_bounds = array<i64: 32, 16>}, {pipeline_mode = #tpu.pipeline_mode<synchronous>, transform_indices = @transform_4, window_bounds = array<i64: 16, 32>}, {transform_indices = @transform_5, window_bounds = array<i64: 1, 1, 32, 32>}]} {
    %c0 = arith.constant 0 : index
    %c0_0 = arith.constant 0 : index
    %0 = vector.load %arg5[%c0, %c0_0] : memref<32x16xf32, #tpu.memory_space<vmem>>, vector<32x16xf32>
    %c0_1 = arith.constant 0 : index
    %c0_2 = arith.constant 0 : index
    %c0_3 = arith.constant 0 : index
    %c0_4 = arith.constant 0 : index
    %1 = vector.load %arg2[%c0_1, %c0_2, %c0_3, %c0_4] : memref<1x1x16x16xf32, #tpu.memory_space<vmem>>, vector<1x1x16x16xf32>
    %2 = vector.shape_cast %1 : vector<1x1x16x16xf32> to vector<16x16xf32>
    %cst = arith.constant dense<0.000000e+00> : vector<32x16xf32>
    %3 = tpu.matmul %0, %2, %cst {dimension_numbers = #tpu.dot_dimension_numbers<[1], [0], [0], [1], [0, 0, 1, 1], [], []>} : vector<32x16xf32>, vector<16x16xf32>, vector<32x16xf32> -> vector<32x16xf32>
    %c0_5 = arith.constant 0 : index
    %c0_6 = arith.constant 0 : index
    %4 = vector.load %arg8[%c0_5, %c0_6] : memref<32x16xf32, #tpu.memory_space<vmem>>, vector<32x16xf32>
    tpu.vector_store %arg8[%c0_5, %c0_6], %3 {strides = array<i32>} : memref<32x16xf32, #tpu.memory_space<vmem>>, vector<32x16xf32>,
    %c0_i32 = arith.constant 0 : i32
    %5 = arith.cmpi eq, %arg1, %c0_i32 : i32
    %cst_7 = arith.constant 0.000000e+00 : f32
    %cst_8 = arith.constant 2.500000e-01 : f32
    %6 = arith.select %5, %cst_7, %cst_8 : f32
    %c0_i32_9 = arith.constant 0 : i32
    %7 = arith.cmpi eq, %arg1, %c0_i32_9 : i32
    %cst_10 = arith.constant 0.000000e+00 : f32
    %cst_11 = arith.constant 2.500000e-01 : f32
    %8 = arith.select %7, %cst_10, %cst_11 : f32
    %c0_12 = arith.constant 0 : index
    %c0_13 = arith.constant 0 : index
    %c0_14 = arith.constant 0 : index
    %c0_15 = arith.constant 0 : index
    %9 = vector.load %arg2[%c0_12, %c0_13, %c0_14, %c0_15] : memref<1x1x16x16xf32, #tpu.memory_space<vmem>>, vector<1x1x1x16xf32>
    %10 = vector.shape_cast %9 : vector<1x1x1x16xf32> to vector<1x16xf32>
    %cst_16 = arith.constant 7.500000e-01 : f32
    %11 = vector.broadcast %cst_16 : f32 to vector<1x16xf32>
    %12 = arith.mulf %11, %10 : vector<1x16xf32>
    %c0_17 = arith.constant 0 : index
    %c0_18 = arith.constant 0 : index
    %c7 = arith.constant 7 : index
    %c0_19 = arith.constant 0 : index
    %13 = vector.load %arg3[%c0_17, %c0_18, %c7, %c0_19] : memref<1x1x8x16xf32, #tpu.memory_space<vmem>>, vector<1x1x1x16xf32>
    %14 = vector.shape_cast %13 : vector<1x1x1x16xf32> to vector<1x16xf32>
    %15 = vector.broadcast %6 : f32 to vector<1x16xf32>
    %16 = arith.mulf %15, %14 : vector<1x16xf32>
    %17 = arith.addf %12, %16 : vector<1x16xf32>
    %c0_20 = arith.constant 0 : index
    %c0_21 = arith.constant 0 : index
    %18 = vector.load %arg8[%c0_20, %c0_21] : memref<32x16xf32, #tpu.memory_space<vmem>>, vector<1x16xf32>
    tpu.vector_store %arg8[%c0_20, %c0_21], %17 {strides = array<i32>} : memref<32x16xf32, #tpu.memory_space<vmem>>, vector<1x16xf32>,
    %c0_22 = arith.constant 0 : index
    %c0_23 = arith.constant 0 : index
    %c15 = arith.constant 15 : index
    %c0_24 = arith.constant 0 : index
    %19 = vector.load %arg2[%c0_22, %c0_23, %c15, %c0_24] : memref<1x1x16x16xf32, #tpu.memory_space<vmem>>, vector<1x1x1x16xf32>
    %20 = vector.shape_cast %19 : vector<1x1x1x16xf32> to vector<1x16xf32>
    %cst_25 = arith.constant 7.500000e-01 : f32
    %21 = vector.broadcast %cst_25 : f32 to vector<1x16xf32>
    %22 = arith.mulf %21, %20 : vector<1x16xf32>
    %c0_26 = arith.constant 0 : index
    %c0_27 = arith.constant 0 : index
    %c0_28 = arith.constant 0 : index
    %c0_29 = arith.constant 0 : index
    %23 = vector.load %arg4[%c0_26, %c0_27, %c0_28, %c0_29] : memref<1x1x8x16xf32, #tpu.memory_space<vmem>>, vector<1x1x1x16xf32>
    %24 = vector.shape_cast %23 : vector<1x1x1x16xf32> to vector<1x16xf32>
    %25 = vector.broadcast %8 : f32 to vector<1x16xf32>
    %26 = arith.mulf %25, %24 : vector<1x16xf32>
    %27 = arith.addf %22, %26 : vector<1x16xf32>
    %c31 = arith.constant 31 : index
    %c0_30 = arith.constant 0 : index
    %28 = vector.load %arg8[%c31, %c0_30] : memref<32x16xf32, #tpu.memory_space<vmem>>, vector<1x16xf32>
    tpu.vector_store %arg8[%c31, %c0_30], %27 {strides = array<i32>} : memref<32x16xf32, #tpu.memory_space<vmem>>, vector<1x16xf32>,
    %c0_31 = arith.constant 0 : index
    %c0_32 = arith.constant 0 : index
    %29 = vector.load %arg6[%c0_31, %c0_32] : memref<16x32xf32, #tpu.memory_space<vmem>>, vector<16x32xf32>
    %c0_33 = arith.constant 0 : index
    %c0_34 = arith.constant 0 : index
    %30 = vector.load %arg8[%c0_33, %c0_34] : memref<32x16xf32, #tpu.memory_space<vmem>>, vector<32x16xf32>
    %cst_35 = arith.constant dense<0.000000e+00> : vector<32x32xf32>
    %31 = tpu.matmul %30, %29, %cst_35 {dimension_numbers = #tpu.dot_dimension_numbers<[1], [0], [0], [1], [0, 0, 1, 1], [], []>} : vector<32x16xf32>, vector<16x32xf32>, vector<32x32xf32> -> vector<32x32xf32>
    %c0_36 = arith.constant 0 : index
    %c0_37 = arith.constant 0 : index
    %c0_38 = arith.constant 0 : index
    %c0_39 = arith.constant 0 : index
    %32 = vector.load %arg7[%c0_36, %c0_37, %c0_38, %c0_39] : memref<1x1x32x32xf32, #tpu.memory_space<vmem>>, vector<1x1x32x32xf32>
    %33 = vector.shape_cast %32 : vector<1x1x32x32xf32> to vector<32x32xf32>
    %34 = vector.shape_cast %31 : vector<32x32xf32> to vector<1x1x32x32xf32>
    tpu.vector_store %arg7[%c0_36, %c0_37, %c0_38, %c0_39], %34 {strides = array<i32>} : memref<1x1x32x32xf32, #tpu.memory_space<vmem>>, vector<1x1x32x32xf32>,
    return
  }
  func.func @transform_0(%arg0: i32, %arg1: i32) -> (i32, i32, i32, i32) {
    %c0_i32 = arith.constant 0 : i32
    %c0_i32_0 = arith.constant 0 : i32
    %c0_i32_1 = arith.constant 0 : i32
    return %arg0, %c0_i32, %arg1, %c0_i32_0 : i32, i32, i32, i32
  }
  func.func @transform_1(%arg0: i32, %arg1: i32) -> (i32, i32, i32, i32) {
    %c2_i32 = arith.constant 2 : i32
    %0 = arith.muli %arg1, %c2_i32 : i32
    %c1_i32 = arith.constant 1 : i32
    %1 = arith.subi %0, %c1_i32 : i32
    %c0_i32 = arith.constant 0 : i32
    %2 = arith.maxsi %1, %c0_i32 : i32
    %c0_i32_0 = arith.constant 0 : i32
    %c0_i32_1 = arith.constant 0 : i32
    %c0_i32_2 = arith.constant 0 : i32
    return %arg0, %c0_i32_0, %2, %c0_i32_1 : i32, i32, i32, i32
  }
  func.func @transform_2(%arg0: i32, %arg1: i32) -> (i32, i32, i32, i32) {
    %c1_i32 = arith.constant 1 : i32
    %0 = arith.addi %arg1, %c1_i32 : i32
    %c2_i32 = arith.constant 2 : i32
    %1 = arith.muli %0, %c2_i32 : i32
    %c1_i32_0 = arith.constant 1 : i32
    %2 = arith.minsi %1, %c1_i32_0 : i32
    %c0_i32 = arith.constant 0 : i32
    %c0_i32_1 = arith.constant 0 : i32
    %c0_i32_2 = arith.constant 0 : i32
    return %arg0, %c0_i32, %2, %c0_i32_1 : i32, i32, i32, i32
  }
  func.func @transform_3(%arg0: i32, %arg1: i32) -> (i32, i32) {
    %c0_i32 = arith.constant 0 : i32
    %c0_i32_0 = arith.constant 0 : i32
    %c0_i32_1 = arith.constant 0 : i32
    return %c0_i32, %c0_i32_0 : i32, i32
  }
  func.func @transform_4(%arg0: i32, %arg1: i32) -> (i32, i32) {
    %c0_i32 = arith.constant 0 : i32
    %c0_i32_0 = arith.constant 0 : i32
    %c0_i32_1 = arith.constant 0 : i32
    return %c0_i32, %c0_i32_0 : i32, i32
  }
  func.func @transform_5(%arg0: i32, %arg1: i32) -> (i32, i32, i32, i32) {
    %c0_i32 = arith.constant 0 : i32
    %c0_i32_0 = arith.constant 0 : i32
    %c0_i32_1 = arith.constant 0 : i32
    return %arg0, %c0_i32, %arg1, %c0_i32_0 : i32, i32, i32, i32
  }
}

</mosaic_0001>

<llo_original>
// kernel: tpu_custom_call.1
$region0: #{tpu_custom_call.1}
  #allocation0 [shape = 'u32[]', space=smem, size = 0x4, offset = 0x4, fixed_abs, tag = 'smem constant byte address 0x4 - core index']
  #allocation1 [shape = 'u32[72,128]{1,0:T(1,128)}', space=vmem, size = 0x9000, scoped, tag = 'internal scratch']
  #allocation2 [shape = 'f32[32,16]{1,0:T(8,128)}', space=vmem, size = 0x4000, scoped, tag = 'scratch operand']
  %s0 = inlined_call_operand.vmem [shape: f32[2,1,16,16], index: 0, kind: input, shape index: {}]
  %s1 = inlined_call_operand.hbm [shape: f32[2,1,16,16], index: 1, kind: input, shape index: {}]
  %s2 = inlined_call_operand.hbm [shape: f32[2,1,16,16], index: 2, kind: input, shape index: {}]
  %s3 = inlined_call_operand.vmem [shape: f32[32,16], index: 3, kind: input, shape index: {}]
  %s4 = inlined_call_operand.vmem [shape: f32[16,32], index: 4, kind: input, shape index: {}]
  %s5 = inlined_call_operand.hbm [shape: f32[2,1,32,32], index: 5, kind: output, shape index: {}]
  %s6 = sld [smem:[#allocation0]]
  $region61: #{tpu_custom_call.1} parent=0
    _
  %s8 = ssub.s32 1, %s6
  %s9 = scalar_select 0, %s8, %s6
  $region1: #{tpu_custom_call.1} parent=0
    #allocation3 [shape = 'u8[8192]{0}', space=vmem, size = 0x2000, scoped, tag = 'input window, operand 1']
    #allocation4 [shape = 's32[2]{0}', space=sflag, size = 0x8, scoped, tag = 'scoped memory for tpu_custom_call.1']
    #allocation5 [shape = 's32[2]{0}', space=sflag, size = 0x8, scoped, tag = 'scoped memory for tpu_custom_call.1']
    #allocation6 [shape = 'u8[8192]{0}', space=vmem, size = 0x2000, scoped, tag = 'input window, operand 2']
    #allocation7 [shape = 's32[2]{0}', space=sflag, size = 0x8, scoped, tag = 'scoped memory for tpu_custom_call.1']
    #allocation8 [shape = 'u8[32768]{0}', space=vmem, size = 0x8000, scoped, tag = 'output window, operand 0']
    %10 = vsyncpa [#allocation4], 0
    %s11 = scalar_lea.sflag [#allocation4], 1
    %12 = vsyncpa %s11, 0
    %13 = vsyncpa [#allocation7], 0
    %s14 = scalar_lea.sflag [#allocation7], 1
    %15 = vsyncpa %s14, 0
    %16 = vsyncpa [#allocation5], 0
    %s17 = scalar_lea.sflag [#allocation5], 1
    %18 = vsyncpa %s17, 0
    loop: start=0, step=1, limit=4
    $region2: #{tpu_custom_call.1} parent=1 // loop_pre_header
      _
    $region3: #{tpu_custom_call.1} parent=1 // loop_header
      %s20 = sphi 0, %s24
      %p21 = scmp.ge.s32.totalorder %s20, 4
      %s27 = sphi 0, %s39
      %s28 = sphi 0, %s35
      %s29 = sphi 0, %s27
      %s30 = sphi 0, %s28
      %s31 = sphi 0, %s29
      %s32 = sphi 0, %s30
      %s44 = sphi 0, %s46
      %s47 = sphi 0, %s44
      %s48 = sphi 0, %s47
      %s64 = sphi 0, %s48
      %s80 = sphi 0, %s82
      %s83 = sphi 0, %s80
      %s84 = sphi 0, %s83
      %s100 = sphi 0, %s84
      %s116 = sphi 0, %s118
      %s119 = sphi 0, %s116
      %s120 = sphi 0, %s119
      %s136 = sphi 0, %s120
      %s140 = sphi 0, %s140
      %s142 = sphi 0, %s140
      %s143 = sphi 0, %s142
      %s157 = sphi 0, %s143
      %s161 = sphi 0, %s161
      %s163 = sphi 0, %s161
      %s164 = sphi 0, %s163
      %s178 = sphi 0, %s164
      %s186 = sphi 0, %s188
      %s189 = sphi 0, %s186
      %s190 = sphi 0, %s189
      %s206 = sphi 0, %s190
    $region4: #{tpu_custom_call.1} parent=1 // loop_header_branch
      %23 = sbr.rel (%p21) target = $region8
    $region5: #{tpu_custom_call.1} parent=1 // loop_body
      %s25 = ssub.s32 %s20, 1
      %s26 = ssub.s32 %s20, 2
      %s33 = sadd.s32 1, %s28
      %p34 = scmp.ge.s32.totalorder %s33, 1
      %s35 = scalar_select %p34, 0, %s33
      %s36 = sadd.s32 1, %s27
      %s37 = scalar_select %p34, %s36, %s27
      %p38 = scmp.ge.s32.totalorder %s37, 2
      %s39 = scalar_select %p38, 0, %s37
      %s40 = ssub.s32 %s27, %s39
      %s41 = ssub.s32 %s28, %s35
      %s42 = sor.u32 %s40, %s41
      %p43 = scmp.eq.s32.totalorder %s42, 0
      %s45 = sadd.s32 %s44, 1
      %s46 = scalar_select %p43, %s44, %s45
      %p49 = pneg %p43
      %p50 = scmp.eq.s32.totalorder %s20, 1
      %p51 = por %p49, %p50
      %p52 = scmp.ne.s32.totalorder %s44, %s47
      %p53 = scmp.eq.s32.totalorder %s20, 0
      %p54 = por %p52, %p53
      %p55 = scmp.ne.s32.totalorder %s44, %s47
      %p56 = scmp.eq.s32.totalorder %s25, 1
      %p57 = por %p55, %p56
      %p58 = scmp.ne.s32.totalorder %s47, %s48
      %p59 = scmp.eq.s32.totalorder %s25, 0
      %p60 = por %p58, %p59
      %p61 = scmp.ne.s32.totalorder %s47, %s48
      %p62 = scmp.eq.s32.totalorder %s26, 1
      %p63 = por %p61, %p62
      %p65 = scmp.ne.s32.totalorder %s48, %s64
      %p66 = scmp.eq.s32.totalorder %s26, 0
      %p67 = por %p65, %p66
      %s68 = smul.u32 %s28, 2
      %s69 = ssub.s32 %s68, 1
      %p70 = scmp.gt.s32.totalorder %s69, 0
      %s71 = scalar_select %p70, %s69, 0
      %s72 = smul.u32 %s35, 2
      %s73 = ssub.s32 %s72, 1
      %p74 = scmp.gt.s32.totalorder %s73, 0
      %s75 = scalar_select %p74, %s73, 0
      %s76 = ssub.s32 %s27, %s39
      %s77 = ssub.s32 %s71, %s75
      %s78 = sor.u32 %s76, %s77
      %p79 = scmp.eq.s32.totalorder %s78, 0
      %s81 = sadd.s32 %s80, 1
      %s82 = scalar_select %p79, %s80, %s81
      %p85 = pneg %p79
      %p86 = scmp.eq.s32.totalorder %s20, 1
      %p87 = por %p85, %p86
      %p88 = scmp.ne.s32.totalorder %s80, %s83
      %p89 = scmp.eq.s32.totalorder %s20, 0
      %p90 = por %p88, %p89
      %p91 = scmp.ne.s32.totalorder %s80, %s83
      %p92 = scmp.eq.s32.totalorder %s25, 1
      %p93 = por %p91, %p92
      %p94 = scmp.ne.s32.totalorder %s83, %s84
      %p95 = scmp.eq.s32.totalorder %s25, 0
      %p96 = por %p94, %p95
      %p97 = scmp.ne.s32.totalorder %s83, %s84
      %p98 = scmp.eq.s32.totalorder %s26, 1
      %p99 = por %p97, %p98
      %p101 = scmp.ne.s32.totalorder %s84, %s100
      %p102 = scmp.eq.s32.totalorder %s26, 0
      %p103 = por %p101, %p102
      %s104 = sadd.s32 %s28, 1
      %s105 = smul.u32 %s104, 2
      %p106 = scmp.lt.s32.totalorder %s105, 1
      %s107 = scalar_select %p106, %s105, 1
      %s108 = sadd.s32 %s35, 1
      %s109 = smul.u32 %s108, 2
      %p110 = scmp.lt.s32.totalorder %s109, 1
      %s111 = scalar_select %p110, %s109, 1
      %s112 = ssub.s32 %s27, %s39
      %s113 = ssub.s32 %s107, %s111
      %s114 = sor.u32 %s112, %s113
      %p115 = scmp.eq.s32.totalorder %s114, 0
      %s117 = sadd.s32 %s116, 1
      %s118 = scalar_select %p115, %s116, %s117
      %p121 = pneg %p115
      %p122 = scmp.eq.s32.totalorder %s20, 1
      %p123 = por %p121, %p122
      %p124 = scmp.ne.s32.totalorder %s116, %s119
      %p125 = scmp.eq.s32.totalorder %s20, 0
      %p126 = por %p124, %p125
      %p127 = scmp.ne.s32.totalorder %s116, %s119
      %p128 = scmp.eq.s32.totalorder %s25, 1
      %p129 = por %p127, %p128
      %p130 = scmp.ne.s32.totalorder %s119, %s120
      %p131 = scmp.eq.s32.totalorder %s25, 0
      %p132 = por %p130, %p131
      %p133 = scmp.ne.s32.totalorder %s119, %s120
      %p134 = scmp.eq.s32.totalorder %s26, 1
      %p135 = por %p133, %p134
      %p137 = scmp.ne.s32.totalorder %s120, %s136
      %p138 = scmp.eq.s32.totalorder %s26, 0
      %p139 = por %p137, %p138
      %s141 = sadd.s32 %s140, 1
      %p144 = scmp.eq.s32.totalorder %s20, 1
      %p145 = scmp.ne.s32.totalorder %s140, %s142
      %p146 = scmp.eq.s32.totalorder %s20, 0
      %p147 = por %p145, %p146
      %p148 = scmp.ne.s32.totalorder %s140, %s142
      %p149 = scmp.eq.s32.totalorder %s25, 1
      %p150 = por %p148, %p149
      %p151 = scmp.ne.s32.totalorder %s142, %s143
      %p152 = scmp.eq.s32.totalorder %s25, 0
      %p153 = por %p151, %p152
      %p154 = scmp.ne.s32.totalorder %s142, %s143
      %p155 = scmp.eq.s32.totalorder %s26, 1
      %p156 = por %p154, %p155
      %p158 = scmp.ne.s32.totalorder %s143, %s157
      %p159 = scmp.eq.s32.totalorder %s26, 0
      %p160 = por %p158, %p159
      %s162 = sadd.s32 %s161, 1
      %p165 = scmp.eq.s32.totalorder %s20, 1
      %p166 = scmp.ne.s32.totalorder %s161, %s163
      %p167 = scmp.eq.s32.totalorder %s20, 0
      %p168 = por %p166, %p167
      %p169 = scmp.ne.s32.totalorder %s161, %s163
      %p170 = scmp.eq.s32.totalorder %s25, 1
      %p171 = por %p169, %p170
      %p172 = scmp.ne.s32.totalorder %s163, %s164
      %p173 = scmp.eq.s32.totalorder %s25, 0
      %p174 = por %p172, %p173
      %p175 = scmp.ne.s32.totalorder %s163, %s164
      %p176 = scmp.eq.s32.totalorder %s26, 1
      %p177 = por %p175, %p176
      %p179 = scmp.ne.s32.totalorder %s164, %s178
      %p180 = scmp.eq.s32.totalorder %s26, 0
      %p181 = por %p179, %p180
      %s182 = ssub.s32 %s27, %s39
      %s183 = ssub.s32 %s28, %s35
      %s184 = sor.u32 %s182, %s183
      %p185 = scmp.eq.s32.totalorder %s184, 0
      %s187 = sadd.s32 %s186, 1
      %s188 = scalar_select %p185, %s186, %s187
      %p191 = pneg %p185
      %p192 = scmp.eq.s32.totalorder %s20, 1
      %p193 = por %p191, %p192
      %p194 = scmp.ne.s32.totalorder %s186, %s189
      %p195 = scmp.eq.s32.totalorder %s20, 0
      %p196 = por %p194, %p195
      %p197 = scmp.ne.s32.totalorder %s186, %s189
      %p198 = scmp.eq.s32.totalorder %s25, 1
      %p199 = por %p197, %p198
      %p200 = scmp.ne.s32.totalorder %s189, %s190
      %p201 = scmp.eq.s32.totalorder %s25, 0
      %p202 = por %p200, %p201
      %p203 = scmp.ne.s32.totalorder %s189, %s190
      %p204 = scmp.eq.s32.totalorder %s26, 1
      %p205 = por %p203, %p204
      %p207 = scmp.ne.s32.totalorder %s190, %s206
      %p208 = scmp.eq.s32.totalorder %s26, 0
      %p209 = por %p207, %p208
      %p210 = scmp.le.s32.totalorder 1, %s20
      %p211 = scmp.lt.s32.totalorder %s20, 3
      %p212 = pnand %p210, %p211
      %p213 = pneg %p212
      // Predicated region
      $region9: #{tpu_custom_call.1} parent=5 // pred_check
        _
      $region10: #{tpu_custom_call.1} parent=5 // pred_check_branch
        %215 = sbr.rel (%p212) target = $region12
      $region11: #{tpu_custom_call.1} parent=5 // pred_region
        %s216 = ssub.s32 %s20, 1
        // Predicated region
        $region13: #{tpu_custom_call.1} parent=11 // pred_check
          %p217 = pneg %p153
        $region14: #{tpu_custom_call.1} parent=11 // pred_check_branch
          %219 = sbr.rel (%p217) target = $region16
        $region15: #{tpu_custom_call.1} parent=11 // pred_region
          _
        $region16: #{tpu_custom_call.1} parent=11 // pred_fallthru
          _
        // Predicated region
        $region17: #{tpu_custom_call.1} parent=11 // pred_check
          %p220 = pneg %p174
        $region18: #{tpu_custom_call.1} parent=11 // pred_check_branch
          %222 = sbr.rel (%p220) target = $region20
        $region19: #{tpu_custom_call.1} parent=11 // pred_region
          _
        $region20: #{tpu_custom_call.1} parent=11 // pred_fallthru
          _
      $region12: #{tpu_custom_call.1} parent=5 // pred_fallthru
        _
      %p223 = scmp.lt.s32.totalorder %s20, 2
      // Predicated region
      $region21: #{tpu_custom_call.1} parent=5 // pred_check
        %p224 = pneg %p223
      $region22: #{tpu_custom_call.1} parent=5 // pred_check_branch
        %226 = sbr.rel (%p224) target = $region24
      $region23: #{tpu_custom_call.1} parent=5 // pred_region
        // Predicated region
        $region25: #{tpu_custom_call.1} parent=23 // pred_check
          %p227 = pneg %p54
        $region26: #{tpu_custom_call.1} parent=23 // pred_check_branch
          %229 = sbr.rel (%p227) target = $region28
        $region27: #{tpu_custom_call.1} parent=23 // pred_region
          %s230 = smul.u32 2, %s28
          %p231 = scmp.lt.s32.totalorder %s27, 1
          %s232 = scalar_select %p231, %s27, 1
          %p233 = scmp.lt.s32.totalorder %s230, 1
          %s234 = scalar_select %p233, %s230, 1
          %s235 = smul.addr %s232, 2
          %s236 = sadd.s32 %s234, %s235
          %s237 = smul.addr %s236, 8
          %s238 = scalar_lea.vmem %s0, %s237
          %s239 = smul.u32 2, %s28
        $region28: #{tpu_custom_call.1} parent=23 // pred_fallthru
          _
        // Predicated region
        $region29: #{tpu_custom_call.1} parent=23 // pred_check
          %p240 = pneg %p90
        $region30: #{tpu_custom_call.1} parent=23 // pred_check_branch
          %242 = sbr.rel (%p240) target = $region32
        $region31: #{tpu_custom_call.1} parent=23 // pred_region
          %s243 = sand.u32 %s80, 1
          %s244 = scalar_lea.sflag [#allocation4], %s243
          %s245 = sand.u32 %s80, 1
          %s246 = smul.addr %s245, 8
          %s247 = scalar_lea.vmem [#allocation3], %s246
          %s248 = smul.u32 %s28, 2
          %s249 = ssub.s32 %s248, 1
          %p250 = scmp.gt.s32.totalorder %s249, 0
          %s251 = scalar_select %p250, %s249, 0
          %253 = vsyncadd %s244, 0
          %s254 = smul.addr %s27, 2
          %s255 = sadd.s32 %s251, %s254
          %s256 = smul.addr %s255, 8
          %s257 = scalar_lea.hbm %s1, %s256
          %s259 = sshll.u32 %s257, 4
          %s260 = int_to_ptr.hbm [resolvable:$true] %s259
          %s261 = sshll.u32 %s247, 4
          %s262 = int_to_ptr.vmem [resolvable:$true] %s261
          %264 = dma.hbm_to_vmem [thread:$0]  %s260, 128, %s262, %s244
        $region32: #{tpu_custom_call.1} parent=23 // pred_fallthru
          _
        // Predicated region
        $region33: #{tpu_custom_call.1} parent=23 // pred_check
          %p265 = pneg %p126
        $region34: #{tpu_custom_call.1} parent=23 // pred_check_branch
          %267 = sbr.rel (%p265) target = $region36
        $region35: #{tpu_custom_call.1} parent=23 // pred_region
          %s268 = sand.u32 %s116, 1
          %s269 = scalar_lea.sflag [#allocation7], %s268
          %s270 = sand.u32 %s116, 1
          %s271 = smul.addr %s270, 8
          %s272 = scalar_lea.vmem [#allocation6], %s271
          %s273 = sadd.s32 %s28, 1
          %s274 = smul.u32 %s273, 2
          %p275 = scmp.lt.s32.totalorder %s274, 1
          %s276 = scalar_select %p275, %s274, 1
          %278 = vsyncadd %s269, 0
          %s279 = smul.addr %s27, 2
          %s280 = sadd.s32 %s276, %s279
          %s281 = smul.addr %s280, 8
          %s282 = scalar_lea.hbm %s2, %s281
          %s284 = sshll.u32 %s282, 4
          %s285 = int_to_ptr.hbm [resolvable:$true] %s284
          %s286 = sshll.u32 %s272, 4
          %s287 = int_to_ptr.vmem [resolvable:$true] %s286
          %289 = dma.hbm_to_vmem [thread:$0]  %s285, 128, %s287, %s269
        $region36: #{tpu_custom_call.1} parent=23 // pred_fallthru
          _
      $region24: #{tpu_custom_call.1} parent=5 // pred_fallthru
        _
      %p290 = scmp.le.s32.totalorder 1, %s20
      %p291 = scmp.lt.s32.totalorder %s20, 3
      %p292 = pnand %p290, %p291
      %p293 = pneg %p292
      // Predicated region
      $region37: #{tpu_custom_call.1} parent=5 // pred_check
        _
      $region38: #{tpu_custom_call.1} parent=5 // pred_check_branch
        %295 = sbr.rel (%p292) target = $region40
      $region39: #{tpu_custom_call.1} parent=5 // pred_region
        %s296 = ssub.s32 %s20, 1
        %s297 = sand.u32 %s83, 1
        %s298 = scalar_lea.sflag [#allocation4], %s297
        %s299 = sand.u32 %s83, 1
        %s300 = smul.addr %s299, 8
        %s301 = scalar_lea.vmem [#allocation3], %s300
        // Predicated region
        $region41: #{tpu_custom_call.1} parent=39 // pred_check
          %p302 = pneg %p96
        $region42: #{tpu_custom_call.1} parent=39 // pred_check_branch
          %304 = sbr.rel (%p302) target = $region44
        $region43: #{tpu_custom_call.1} parent=39 // pred_region
          %306 = dma.done %s298, 128
        $region44: #{tpu_custom_call.1} parent=39 // pred_fallthru
          _
        %s307 = sand.u32 %s119, 1
        %s308 = scalar_lea.sflag [#allocation7], %s307
        %s309 = sand.u32 %s119, 1
        %s310 = smul.addr %s309, 8
        %s311 = scalar_lea.vmem [#allocation6], %s310
        // Predicated region
        $region45: #{tpu_custom_call.1} parent=39 // pred_check
          %p312 = pneg %p132
        $region46: #{tpu_custom_call.1} parent=39 // pred_check_branch
          %314 = sbr.rel (%p312) target = $region48
        $region47: #{tpu_custom_call.1} parent=39 // pred_region
          %316 = dma.done %s308, 128
        $region48: #{tpu_custom_call.1} parent=39 // pred_fallthru
          _
        %s317 = smul.u32 2, %s30
        %p318 = scmp.lt.s32.totalorder %s29, 1
        %s319 = scalar_select %p318, %s29, 1
        %p320 = scmp.lt.s32.totalorder %s317, 1
        %s321 = scalar_select %p320, %s317, 1
        %s322 = smul.addr %s319, 2
        %s323 = sadd.s32 %s321, %s322
        %s324 = smul.addr %s323, 8
        %s325 = scalar_lea.vmem %s0, %s324
        %p326 = pneg %p60
        %p327 = pneg %p57
        %s328 = sand.u32 %s83, 1
        %s329 = scalar_lea.sflag [#allocation4], %s328
        %s330 = sand.u32 %s83, 1
        %s331 = smul.addr %s330, 8
        %s332 = scalar_lea.vmem [#allocation3], %s331
        %p333 = pneg %p96
        %p334 = pneg %p93
        %s335 = sand.u32 %s119, 1
        %s336 = scalar_lea.sflag [#allocation7], %s335
        %s337 = sand.u32 %s119, 1
        %s338 = smul.addr %s337, 8
        %s339 = scalar_lea.vmem [#allocation6], %s338
        %p340 = pneg %p132
        %p341 = pneg %p129
        %p342 = pneg %p153
        %p343 = pneg %p150
        %p344 = pneg %p174
        %p345 = pneg %p171
        %p346 = pneg %p202
        %p347 = pneg %p199
        %s348 = sand.u32 %s189, 1
        %s349 = scalar_lea.sflag [#allocation5], %s348
        %s350 = sand.u32 %s189, 1
        %s351 = smul.addr %s350, 32
        %s352 = scalar_lea.vmem [#allocation8], %s351
        %s353 = smul.u32 2, %s30
        %p354 = scmp.lt.s32.totalorder %s29, 1
        %s355 = scalar_select %p354, %s29, 1
        %p356 = scmp.lt.s32.totalorder %s353, 1
        %s357 = scalar_select %p356, %s353, 1
        %s358 = smul.addr %s355, 2
        %s359 = sadd.s32 %s357, %s358
        %s360 = smul.addr %s359, 8
        %s361 = scalar_lea.vmem %s0, %s360
        %s362 = smul.u32 2, %s30
        %s363 = smul.u32 %s30, 2
        %s364 = ssub.s32 %s363, 1
        %p365 = scmp.gt.s32.totalorder %s364, 0
        %s366 = scalar_select %p365, %s364, 0
        %s367 = sadd.s32 %s30, 1
        %s368 = smul.u32 %s367, 2
        %p369 = scmp.lt.s32.totalorder %s368, 1
        %s370 = scalar_select %p369, %s368, 1
        %s371 = smul.u32 4, %s30
        %v372 = vld [vmem:[%s3] sm:$0xff]
        %v373 = vld [vmem:[%s3 + $0x8] sm:$0xff]
        %v374 = vld [vmem:[%s3 + $0x10] sm:$0xff]
        %v375 = vld [vmem:[%s3 + $0x18] sm:$0xff]
        %v376 = vld [vmem:[%s361] sm:$0xff]
        %v377 = vld [vmem:[%s361 + $0x8] sm:$0xff]
        %vm378 = vcmask 130048
        %v380 = vsel %vm378, %v372, 0
        %v383 = vsel %vm378, %v373, 0
        %v386 = vsel %vm378, %v374, 0
        %v389 = vsel %vm378, %v375, 0
        %391 = vmatpush.msra.mxu0 0.0
        %392 = vmatpush.msra.mxu0 0.0
        %393 = vmatpush.msra.mxu0 0.0
        %394 = vmatpush.msra.mxu0 0.0
        %395 = vmatpush.msra.mxu0 0.0
        %396 = vmatpush.msra.mxu0 0.0
        %397 = vmatpush.msra.mxu0 0.0
        %398 = vmatpush.msra.mxu0 0.0
        %399 = vmatpush.msra.mxu0 0.0
        %400 = vmatpush.msra.mxu0 0.0
        %401 = vmatpush.msra.mxu0 0.0
        %402 = vmatpush.msra.mxu0 0.0
        %403 = vmatpush.msra.mxu0 0.0
        %404 = vmatpush.msra.mxu0 0.0
        %405 = vmatpush.msra.mxu0 %v377
        %406 = vmatpush.msra.mxu0 %v376
        %407 = vmatmul.f32.gmra.mxu0 %v380
        %v408 = vpop.f32.mrf.mxu0
        %v409 = vadd.f32 0.0, %v408
        %410 = vmatmul.f32.gmra.mxu0 %v383
        %v411 = vpop.f32.mrf.mxu0
        %v412 = vadd.f32 0.0, %v411
        %413 = vmatmul.f32.gmra.mxu0 %v386
        %v414 = vpop.f32.mrf.mxu0
        %v415 = vadd.f32 0.0, %v414
        %416 = vmatmul.f32.gmra.mxu0 %v389
        %v417 = vpop.f32.mrf.mxu0
        %v418 = vadd.f32 0.0, %v417
        %419 = vdwg.mxu0
        %420 = vst.msk [vmem:[#allocation2] sm:$0xff] %vm378, %v409
        %421 = vst.msk [vmem:[#allocation2 + $0x8] sm:$0xff] %vm378, %v412
        %422 = vst.msk [vmem:[#allocation2 + $0x10] sm:$0xff] %vm378, %v415
        %423 = vst.msk [vmem:[#allocation2 + $0x18] sm:$0xff] %vm378, %v418
        %p424 = scmp.eq.s32.totalorder %s30, 0
        %s425 = scalar_select %p424, 0.0, 0.25
        %v426 = vld [vmem:[%s361] sm:$0x1]
        %v427 = vmul.f32 %v426, 0.75
        %v428 = vld [vmem:[%s301 + $0x7] sm:$0x1]
        %v429 = vstv %s425
        %v430 = vmul.f32 %v429, %v428
        %v431 = vadd.f32 %v427, %v430
        %vm432 = vcmask 122880
        %433 = vst.msk [vmem:[#allocation2] sm:$0x1] %vm432, %v431
        %v434 = vld [vmem:[%s361 + $0xf] sm:$0x1]
        %v435 = vmul.f32 %v434, 0.75
        %v436 = vld [vmem:[%s311] sm:$0x1]
        %v437 = vmul.f32 %v429, %v436
        %v438 = vadd.f32 %v435, %v437
        %439 = vst.msk [vmem:[#allocation2 + $0x1f] sm:$0x1] %vm432, %v438
        %v440 = vld [vmem:[%s4] sm:$0xff]
        %v441 = vld [vmem:[%s4 + $0x8] sm:$0xff]
        %v442 = vld [vmem:[#allocation2] sm:$0xff]
        %v443 = vld [vmem:[#allocation2 + $0x8] sm:$0xff]
        %v444 = vld [vmem:[#allocation2 + $0x10] sm:$0xff]
        %v445 = vld [vmem:[#allocation2 + $0x18] sm:$0xff]
        %v447 = vsel %vm378, %v442, 0
        %v450 = vsel %vm378, %v443, 0
        %v453 = vsel %vm378, %v444, 0
        %v456 = vsel %vm378, %v445, 0
        %458 = vmatpush.msra.mxu0 0.0
        %459 = vmatpush.msra.mxu0 0.0
        %460 = vmatpush.msra.mxu0 0.0
        %461 = vmatpush.msra.mxu0 0.0
        %462 = vmatpush.msra.mxu0 0.0
        %463 = vmatpush.msra.mxu0 0.0
        %464 = vmatpush.msra.mxu0 0.0
        %465 = vmatpush.msra.mxu0 0.0
        %466 = vmatpush.msra.mxu0 0.0
        %467 = vmatpush.msra.mxu0 0.0
        %468 = vmatpush.msra.mxu0 0.0
        %469 = vmatpush.msra.mxu0 0.0
        %470 = vmatpush.msra.mxu0 0.0
        %471 = vmatpush.msra.mxu0 0.0
        %472 = vmatpush.msra.mxu0 %v441
        %473 = vmatpush.msra.mxu0 %v440
        %474 = vmatmul.f32.gmra.mxu0 %v447
        %v475 = vpop.f32.mrf.mxu0
        %v476 = vadd.f32 0.0, %v475
        %477 = vmatmul.f32.gmra.mxu0 %v450
        %v478 = vpop.f32.mrf.mxu0
        %v479 = vadd.f32 0.0, %v478
        %480 = vmatmul.f32.gmra.mxu0 %v453
        %v481 = vpop.f32.mrf.mxu0
        %v482 = vadd.f32 0.0, %v481
        %483 = vmatmul.f32.gmra.mxu0 %v456
        %v484 = vpop.f32.mrf.mxu0
        %v485 = vadd.f32 0.0, %v484
        %486 = vdwg.mxu0
        %vm487 = vcmask 261120
        %488 = vst.msk [vmem:[%s352] sm:$0xff] %vm487, %v476
        %489 = vst.msk [vmem:[%s352 + $0x8] sm:$0xff] %vm487, %v479
        %490 = vst.msk [vmem:[%s352 + $0x10] sm:$0xff] %vm487, %v482
        %491 = vst.msk [vmem:[%s352 + $0x18] sm:$0xff] %vm487, %v485
        %s492 = sand.u32 %s189, 1
        %s493 = scalar_lea.sflag [#allocation5], %s492
        %s494 = sand.u32 %s189, 1
        %s495 = smul.addr %s494, 32
        %s496 = scalar_lea.vmem [#allocation8], %s495
        // Predicated region
        $region49: #{tpu_custom_call.1} parent=39 // pred_check
          %p497 = pneg %p199
        $region50: #{tpu_custom_call.1} parent=39 // pred_check_branch
          %499 = sbr.rel (%p497) target = $region52
        $region51: #{tpu_custom_call.1} parent=39 // pred_region
          %s500 = smul.u32 4, %s30
          %502 = vsyncadd %s493, 0
          %s503 = smul.addr %s29, 4
          %s504 = sadd.s32 %s500, %s503
          %s505 = smul.addr %s504, 8
          %s506 = scalar_lea.hbm %s5, %s505
          %s507 = sshll.u32 %s496, 4
          %s508 = int_to_ptr.vmem [resolvable:$true] %s507
          %s509 = sshll.u32 %s506, 4
          %s510 = int_to_ptr.hbm [resolvable:$true] %s509
          %515 = dma.vmem_to_hbm [thread:$0]  %s508, 512, %s510, %s493, 128, 128, 8
        $region52: #{tpu_custom_call.1} parent=39 // pred_fallthru
          _
      $region40: #{tpu_custom_call.1} parent=5 // pred_fallthru
        _
      %p516 = scmp.le.s32.totalorder 2, %s20
      // Predicated region
      $region53: #{tpu_custom_call.1} parent=5 // pred_check
        %p517 = pneg %p516
      $region54: #{tpu_custom_call.1} parent=5 // pred_check_branch
        %519 = sbr.rel (%p517) target = $region56
      $region55: #{tpu_custom_call.1} parent=5 // pred_region
        %s520 = ssub.s32 %s20, 2
        // Predicated region
        $region57: #{tpu_custom_call.1} parent=55 // pred_check
          %p521 = pneg %p205
        $region58: #{tpu_custom_call.1} parent=55 // pred_check_branch
          %523 = sbr.rel (%p521) target = $region60
        $region59: #{tpu_custom_call.1} parent=55 // pred_region
          %s524 = sand.u32 %s190, 1
          %s525 = scalar_lea.sflag [#allocation5], %s524
          %s526 = sand.u32 %s190, 1
          %s527 = smul.addr %s526, 32
          %s528 = scalar_lea.vmem [#allocation8], %s527
          %530 = dma.done %s525, 512
        $region60: #{tpu_custom_call.1} parent=55 // pred_fallthru
          _
      $region56: #{tpu_custom_call.1} parent=5 // pred_fallthru
        _
    $region6: #{tpu_custom_call.1} parent=1 // loop_footer
      %s24 = sadd.s32 1, %s20
    $region7: #{tpu_custom_call.1} parent=1 // loop_footer_branch
      %19 = sbr.rel target = $region3
    $region8: #{tpu_custom_call.1} parent=1 // loop_exit
      _
    %531 = vsyncpa [#allocation4], 1
    %s532 = scalar_lea.sflag [#allocation4], 1
    %533 = vsyncpa %s532, 1
    %534 = vsyncpa [#allocation7], 1
    %s535 = scalar_lea.sflag [#allocation7], 1
    %536 = vsyncpa %s535, 1
    %537 = vsyncpa [#allocation5], 1
    %s538 = scalar_lea.sflag [#allocation5], 1
    %539 = vsyncpa %s538, 1

</llo_original>
